<compile_context>
chip_gen: v5e
topology: v5e:2x2
jax: 0.10.0
libtpu: 0.0.40
codegen_flags: <defaults>
</compile_context>

<pallas_src>
import functools

import jax
import jax.numpy as jnp
from jax.experimental import pallas as pl
from jax.experimental.pallas import tpu as pltpu

_EPS = 1e-5
_LANE = 128


def _mlp_log_kernel(xT_ref,
                    w1_ref, b1_ref, g1_ref, be1_ref,
                    w2_ref, b2_ref, g2_ref, be2_ref,
                    w3T_ref, b3_ref,
                    o_ref, *, n_valid):
    """Whole forward pass, transposed layout: batch on the lane axis.

    n_valid: true (unpadded) batch size; lane columns >= n_valid are padding
    and are excluded from the BatchNorm batch statistics.
    """
    n_pad = xT_ref.shape[-1]                    # static, multiple of 128
    inv_n = 1.0 / float(n_valid)

    xT = xT_ref[...].astype(jnp.float32)        # (num_inputs, N_pad)

    if n_pad != n_valid:
        lane_ids = jax.lax.broadcasted_iota(jnp.int32, (1, n_pad), 1)
        mask = (lane_ids < n_valid).astype(jnp.float32)   # (1, N_pad), 0/1
    else:
        mask = None

    def block(hT, w_ref, b_ref, g_ref, be_ref):
        # Linear: (H, K) @ (K, N) -> (H, N); bias broadcast along lanes.
        h = jnp.dot(w_ref[...], hT, preferred_element_type=jnp.float32) + b_ref[...]
        # ReLU
        h = jnp.maximum(h, 0.0)
        # BatchNorm1d (training mode, biased batch statistics) over the batch
        # (lane) axis, folded into a single per-feature scale/shift.  Padded
        # lane columns are masked out of the statistics only.
        hm = h if mask is None else h * mask
        s = jnp.sum(hm, axis=-1, keepdims=True)          # (H, 1)
        ss = jnp.sum(hm * h, axis=-1, keepdims=True)     # (H, 1)
        mu = s * inv_n
        var = jnp.maximum(ss * inv_n - mu * mu, 0.0)     # guard cancellation
        scale = g_ref[...] * jax.lax.rsqrt(var + _EPS)   # (H, 1)
        shift = be_ref[...] - mu * scale                 # (H, 1)
        return h * scale + shift                         # (H, N)

    h = block(xT, w1_ref, b1_ref, g1_ref, be1_ref)
    h = block(h, w2_ref, b2_ref, g2_ref, be2_ref)

    # LogSpaceConverter: Linear(H -> num_outputs) then exp back to linear
    # space.  num_outputs is tiny (scalar output) -> VPU multiply + sublane
    # reduce instead of a 1-column MXU matmul.
    w3T = w3T_ref[...]                                   # (H, num_outputs)
    b3 = b3_ref[...]                                     # (num_outputs, 1)
    rows = []
    for o in range(o_ref.shape[0]):                      # static tiny loop
        y_o = jnp.sum(h * w3T[:, o:o + 1], axis=0, keepdims=True)  # (1, N)
        rows.append(y_o + b3[o:o + 1, :])
    y = rows[0] if len(rows) == 1 else jnp.concatenate(rows, axis=0)
    o_ref[...] = jnp.exp(y)                              # (num_outputs, N_pad)


def mlp_log_approximator(x, params):
    """x: (N, num_inputs) f32.  Returns (N,) f32 (scalar_output=True)."""
    (w1, b1, g1, be1, w2, b2, g2, be2, w3, b3) = params
    n, num_inputs = x.shape
    hidden = w1.shape[0]
    num_outputs = w3.shape[0]

    # Lane-dense, transposed operands.  Pad the batch (lane) axis to a
    # multiple of 128 so all stores are unmasked; padding is zeros and is
    # excluded from BN stats in-kernel, then dropped below.
    n_pad = ((n + _LANE - 1) // _LANE) * _LANE
    xT = x.T                                   # (num_inputs, N)
    if n_pad != n:
        xT = jnp.pad(xT, ((0, 0), (0, n_pad - n)))

    col = lambda v: v.reshape(-1, 1)           # 1-D params -> (F, 1) columns
    w3T = w3.T                                 # (H, num_outputs)

    flops = 2 * n * (num_inputs * hidden + hidden * hidden + hidden * num_outputs) \
        + 8 * n * hidden                       # ReLU + folded-BN elementwise work
    transcendentals = n * num_outputs + 2 * hidden
    bytes_accessed = 4 * (x.size + sum(int(p.size) for p in params) + n * num_outputs)

    vmem = functools.partial(pl.BlockSpec, memory_space=pltpu.MemorySpace.VMEM)
    out = pl.pallas_call(
        functools.partial(_mlp_log_kernel, n_valid=n),
        out_shape=jax.ShapeDtypeStruct((num_outputs, n_pad), jnp.float32),
        in_specs=[vmem() for _ in range(11)],
        out_specs=vmem(),
        compiler_params=pltpu.CompilerParams(vmem_limit_bytes=32 << 20),
        cost_estimate=pl.CostEstimate(
            flops=int(flops),
            transcendentals=int(transcendentals),
            bytes_accessed=int(bytes_accessed)),
    )(xT,
      w1, col(b1), col(g1), col(be1),
      w2, col(b2), col(g2), col(be2),
      w3T, col(b3))

    out = out[:, :n]                           # drop padded batch columns
    # scalar_output=True with num_outputs==1 -> (N,) vector.
    return out[0] if num_outputs == 1 else out.T


def init_params(key, num_inputs, num_outputs, hidden_size):
    """Kaiming-normal Linear weights (PyTorch (out, in) layout), zero biases,
    ones/zeros BatchNorm affine params (matches a fresh PyTorch module)."""
    k1, k2, k3 = jax.random.split(key, 3)

    def kaiming(k, fan_out, fan_in):
        std = (2.0 / fan_in) ** 0.5
        return std * jax.random.normal(k, (fan_out, fan_in), dtype=jnp.float32)

    w1 = kaiming(k1, hidden_size, num_inputs)
    b1 = jnp.zeros((hidden_size,), jnp.float32)
    g1 = jnp.ones((hidden_size,), jnp.float32)
    be1 = jnp.zeros((hidden_size,), jnp.float32)

    w2 = kaiming(k2, hidden_size, hidden_size)
    b2 = jnp.zeros((hidden_size,), jnp.float32)
    g2 = jnp.ones((hidden_size,), jnp.float32)
    be2 = jnp.zeros((hidden_size,), jnp.float32)

    w3 = kaiming(k3, num_outputs, hidden_size)
    b3 = jnp.zeros((num_outputs,), jnp.float32)

    return (w1, b1, g1, be1, w2, b2, g2, be2, w3, b3)


def _reference(x, params):
    """Pure-JAX reference (un-folded BN math) for a sanity check."""
    (w1, b1, g1, be1, w2, b2, g2, be2, w3, b3) = params

    def block(h, w, b, g, be):
        h = jnp.maximum(h @ w.T + b, 0.0)
        mu = h.mean(0, keepdims=True)
        var = ((h - mu) ** 2).mean(0, keepdims=True)
        return (h - mu) / jnp.sqrt(var + _EPS) * g + be

    h = block(x, w1, b1, g1, be1)
    h = block(h, w2, b2, g2, be2)
    return jnp.exp(h @ w3.T + b3)[:, 0]


if __name__ == "__main__":
    num_inputs, num_outputs, hidden_size, batch = 4, 1, 32, 8

    key = jax.random.PRNGKey(0)
    kx, kp = jax.random.split(key)
    x = jax.random.normal(kx, (batch, num_inputs), dtype=jnp.float32)
    params = init_params(kp, num_inputs, num_outputs, hidden_size)

    y = mlp_log_approximator(x, params)
    y = jax.block_until_ready(y)

    y_ref = _reference(x, params)
    assert y.shape == (batch,), y.shape
    assert jnp.allclose(y, y_ref, rtol=1e-3, atol=1e-5), (y, y_ref)

    print("KERNEL_OK")
</pallas_src>

<mosaic_0001>
module attributes {stable_mosaic.version = 11 : i64} {
  func.func @_mlp_log_kernel(%arg0: memref<4x128xf32, #tpu.memory_space<vmem>>, %arg1: memref<32x4xf32, #tpu.memory_space<vmem>>, %arg2: memref<32x1xf32, #tpu.memory_space<vmem>>, %arg3: memref<32x1xf32, #tpu.memory_space<vmem>>, %arg4: memref<32x1xf32, #tpu.memory_space<vmem>>, %arg5: memref<32x32xf32, #tpu.memory_space<vmem>>, %arg6: memref<32x1xf32, #tpu.memory_space<vmem>>, %arg7: memref<32x1xf32, #tpu.memory_space<vmem>>, %arg8: memref<32x1xf32, #tpu.memory_space<vmem>>, %arg9: memref<32x1xf32, #tpu.memory_space<vmem>>, %arg10: memref<1x1xf32, #tpu.memory_space<vmem>>, %arg11: memref<1x128xf32, #tpu.memory_space<vmem>>) attributes {dimension_semantics = [], scalar_prefetch = 0 : i64, scratch_operands = 0 : i64, tpu.core_type = #tpu.core_type<tc>} {
    %c0 = arith.constant 0 : index
    %c0_0 = arith.constant 0 : index
    %0 = vector.load %arg0[%c0, %c0_0] : memref<4x128xf32, #tpu.memory_space<vmem>>, vector<4x128xf32>
    %1 = tpu.iota {dimensions = array<i32: 1>} : vector<1x128xi32>
    %c8_i32 = arith.constant 8 : i32
    %2 = vector.broadcast %c8_i32 : i32 to vector<1x128xi32>
    %3 = arith.cmpi slt, %1, %2 : vector<1x128xi32>
    %4 = arith.extui %3 : vector<1x128xi1> to vector<1x128xi32>
    %5 = arith.sitofp %4 : vector<1x128xi32> to vector<1x128xf32>
    %c0_1 = arith.constant 0 : index
    %c0_2 = arith.constant 0 : index
    %6 = vector.load %arg1[%c0_1, %c0_2] : memref<32x4xf32, #tpu.memory_space<vmem>>, vector<32x4xf32>
    %cst = arith.constant dense<0.000000e+00> : vector<32x128xf32>
    %7 = tpu.matmul %6, %0, %cst {dimension_numbers = #tpu.dot_dimension_numbers<[1], [0], [0], [1], [0, 0, 1, 1], [], []>} : vector<32x4xf32>, vector<4x128xf32>, vector<32x128xf32> -> vector<32x128xf32>
    %c0_3 = arith.constant 0 : index
    %c0_4 = arith.constant 0 : index
    %8 = vector.load %arg2[%c0_3, %c0_4] : memref<32x1xf32, #tpu.memory_space<vmem>>, vector<32x1xf32>
    %9 = vector.broadcast %8 : vector<32x1xf32> to vector<32x128xf32>
    %10 = arith.addf %7, %9 : vector<32x128xf32>
    %cst_5 = arith.constant 0.000000e+00 : f32
    %11 = vector.broadcast %cst_5 : f32 to vector<32x128xf32>
    %12 = arith.maximumf %10, %11 : vector<32x128xf32>
    %13 = vector.broadcast %5 : vector<1x128xf32> to vector<32x128xf32>
    %14 = arith.mulf %12, %13 : vector<32x128xf32>
    %cst_6 = arith.constant dense<0.000000e+00> : vector<32xf32>
    %15 = vector.multi_reduction <add>, %14, %cst_6 [1] : vector<32x128xf32> to vector<32xf32>
    %16 = vector.shape_cast %15 : vector<32xf32> to vector<32x1xf32>
    %17 = arith.mulf %14, %12 : vector<32x128xf32>
    %cst_7 = arith.constant dense<0.000000e+00> : vector<32xf32>
    %18 = vector.multi_reduction <add>, %17, %cst_7 [1] : vector<32x128xf32> to vector<32xf32>
    %19 = vector.shape_cast %18 : vector<32xf32> to vector<32x1xf32>
    %cst_8 = arith.constant 1.250000e-01 : f32
    %20 = vector.broadcast %cst_8 : f32 to vector<32x1xf32>
    %21 = arith.mulf %16, %20 : vector<32x1xf32>
    %cst_9 = arith.constant 1.250000e-01 : f32
    %22 = vector.broadcast %cst_9 : f32 to vector<32x1xf32>
    %23 = arith.mulf %19, %22 : vector<32x1xf32>
    %24 = arith.mulf %21, %21 : vector<32x1xf32>
    %25 = arith.subf %23, %24 : vector<32x1xf32>
    %cst_10 = arith.constant 0.000000e+00 : f32
    %26 = vector.broadcast %cst_10 : f32 to vector<32x1xf32>
    %27 = arith.maximumf %25, %26 : vector<32x1xf32>
    %c0_11 = arith.constant 0 : index
    %c0_12 = arith.constant 0 : index
    %28 = vector.load %arg3[%c0_11, %c0_12] : memref<32x1xf32, #tpu.memory_space<vmem>>, vector<32x1xf32>
    %cst_13 = arith.constant 9.99999974E-6 : f32
    %29 = vector.broadcast %cst_13 : f32 to vector<32x1xf32>
    %30 = arith.addf %27, %29 : vector<32x1xf32>
    %31 = math.rsqrt %30 : vector<32x1xf32>
    %32 = arith.mulf %28, %31 : vector<32x1xf32>
    %c0_14 = arith.constant 0 : index
    %c0_15 = arith.constant 0 : index
    %33 = vector.load %arg4[%c0_14, %c0_15] : memref<32x1xf32, #tpu.memory_space<vmem>>, vector<32x1xf32>
    %34 = arith.mulf %21, %32 : vector<32x1xf32>
    %35 = arith.subf %33, %34 : vector<32x1xf32>
    %36 = vector.broadcast %32 : vector<32x1xf32> to vector<32x128xf32>
    %37 = arith.mulf %12, %36 : vector<32x128xf32>
    %38 = vector.broadcast %35 : vector<32x1xf32> to vector<32x128xf32>
    %39 = arith.addf %37, %38 : vector<32x128xf32>
    %c0_16 = arith.constant 0 : index
    %c0_17 = arith.constant 0 : index
    %40 = vector.load %arg5[%c0_16, %c0_17] : memref<32x32xf32, #tpu.memory_space<vmem>>, vector<32x32xf32>
    %cst_18 = arith.constant dense<0.000000e+00> : vector<32x128xf32>
    %41 = tpu.matmul %40, %39, %cst_18 {dimension_numbers = #tpu.dot_dimension_numbers<[1], [0], [0], [1], [0, 0, 1, 1], [], []>} : vector<32x32xf32>, vector<32x128xf32>, vector<32x128xf32> -> vector<32x128xf32>
    %c0_19 = arith.constant 0 : index
    %c0_20 = arith.constant 0 : index
    %42 = vector.load %arg6[%c0_19, %c0_20] : memref<32x1xf32, #tpu.memory_space<vmem>>, vector<32x1xf32>
    %43 = vector.broadcast %42 : vector<32x1xf32> to vector<32x128xf32>
    %44 = arith.addf %41, %43 : vector<32x128xf32>
    %cst_21 = arith.constant 0.000000e+00 : f32
    %45 = vector.broadcast %cst_21 : f32 to vector<32x128xf32>
    %46 = arith.maximumf %44, %45 : vector<32x128xf32>
    %47 = vector.broadcast %5 : vector<1x128xf32> to vector<32x128xf32>
    %48 = arith.mulf %46, %47 : vector<32x128xf32>
    %cst_22 = arith.constant dense<0.000000e+00> : vector<32xf32>
    %49 = vector.multi_reduction <add>, %48, %cst_22 [1] : vector<32x128xf32> to vector<32xf32>
    %50 = vector.shape_cast %49 : vector<32xf32> to vector<32x1xf32>
    %51 = arith.mulf %48, %46 : vector<32x128xf32>
    %cst_23 = arith.constant dense<0.000000e+00> : vector<32xf32>
    %52 = vector.multi_reduction <add>, %51, %cst_23 [1] : vector<32x128xf32> to vector<32xf32>
    %53 = vector.shape_cast %52 : vector<32xf32> to vector<32x1xf32>
    %cst_24 = arith.constant 1.250000e-01 : f32
    %54 = vector.broadcast %cst_24 : f32 to vector<32x1xf32>
    %55 = arith.mulf %50, %54 : vector<32x1xf32>
    %cst_25 = arith.constant 1.250000e-01 : f32
    %56 = vector.broadcast %cst_25 : f32 to vector<32x1xf32>
    %57 = arith.mulf %53, %56 : vector<32x1xf32>
    %58 = arith.mulf %55, %55 : vector<32x1xf32>
    %59 = arith.subf %57, %58 : vector<32x1xf32>
    %cst_26 = arith.constant 0.000000e+00 : f32
    %60 = vector.broadcast %cst_26 : f32 to vector<32x1xf32>
    %61 = arith.maximumf %59, %60 : vector<32x1xf32>
    %c0_27 = arith.constant 0 : index
    %c0_28 = arith.constant 0 : index
    %62 = vector.load %arg7[%c0_27, %c0_28] : memref<32x1xf32, #tpu.memory_space<vmem>>, vector<32x1xf32>
    %cst_29 = arith.constant 9.99999974E-6 : f32
    %63 = vector.broadcast %cst_29 : f32 to vector<32x1xf32>
    %64 = arith.addf %61, %63 : vector<32x1xf32>
    %65 = math.rsqrt %64 : vector<32x1xf32>
    %66 = arith.mulf %62, %65 : vector<32x1xf32>
    %c0_30 = arith.constant 0 : index
    %c0_31 = arith.constant 0 : index
    %67 = vector.load %arg8[%c0_30, %c0_31] : memref<32x1xf32, #tpu.memory_space<vmem>>, vector<32x1xf32>
    %68 = arith.mulf %55, %66 : vector<32x1xf32>
    %69 = arith.subf %67, %68 : vector<32x1xf32>
    %70 = vector.broadcast %66 : vector<32x1xf32> to vector<32x128xf32>
    %71 = arith.mulf %46, %70 : vector<32x128xf32>
    %72 = vector.broadcast %69 : vector<32x1xf32> to vector<32x128xf32>
    %73 = arith.addf %71, %72 : vector<32x128xf32>
    %c0_32 = arith.constant 0 : index
    %c0_33 = arith.constant 0 : index
    %74 = vector.load %arg9[%c0_32, %c0_33] : memref<32x1xf32, #tpu.memory_space<vmem>>, vector<32x1xf32>
    %c0_34 = arith.constant 0 : index
    %c0_35 = arith.constant 0 : index
    %75 = vector.load %arg10[%c0_34, %c0_35] : memref<1x1xf32, #tpu.memory_space<vmem>>, vector<1x1xf32>
    %76 = vector.broadcast %74 : vector<32x1xf32> to vector<32x128xf32>
    %77 = arith.mulf %73, %76 : vector<32x128xf32>
    %cst_36 = arith.constant dense<0.000000e+00> : vector<128xf32>
    %78 = vector.multi_reduction <add>, %77, %cst_36 [0] : vector<32x128xf32> to vector<128xf32>
    %79 = vector.shape_cast %78 : vector<128xf32> to vector<1x128xf32>
    %80 = vector.broadcast %75 : vector<1x1xf32> to vector<1x128xf32>
    %81 = arith.addf %79, %80 : vector<1x128xf32>
    %82 = math.exp %81 : vector<1x128xf32>
    %c0_37 = arith.constant 0 : index
    %c0_38 = arith.constant 0 : index
    %83 = vector.load %arg11[%c0_37, %c0_38] : memref<1x128xf32, #tpu.memory_space<vmem>>, vector<1x128xf32>
    tpu.vector_store %arg11[%c0_37, %c0_38], %82 {strides = array<i32>} : memref<1x128xf32, #tpu.memory_space<vmem>>, vector<1x128xf32>,
    return
  }
}

</mosaic_0001>

<llo_original>
// kernel: tpu_custom_call.1
$region0: #{tpu_custom_call.1}
  #allocation0 [shape = 'u32[]', space=smem, size = 0x4, offset = 0x4, fixed_abs, tag = 'smem constant byte address 0x4 - core index']
  #allocation1 [shape = 'u32[72,128]{1,0:T(1,128)}', space=vmem, size = 0x9000, scoped, tag = 'internal scratch']
  #allocation2 [shape = 'f32[1,1]{1,0:T(1,128)S(1)}', space=vmem, size = 0x200, scoped, tag = 'scoped memory for tpu_custom_call.1']
  %s0 = inlined_call_operand.vmem [shape: f32[4,128], index: 0, kind: input, shape index: {}]
  %s1 = inlined_call_operand.vmem [shape: f32[32,4], index: 1, kind: input, shape index: {}]
  %s2 = inlined_call_operand.vmem [shape: f32[32,1], index: 2, kind: input, shape index: {}]
  %s3 = inlined_call_operand.vmem [shape: f32[32,1], index: 3, kind: input, shape index: {}]
  %s4 = inlined_call_operand.vmem [shape: f32[32,1], index: 4, kind: input, shape index: {}]
  %s5 = inlined_call_operand.vmem [shape: f32[32,32], index: 5, kind: input, shape index: {}]
  %s6 = inlined_call_operand.vmem [shape: f32[32,1], index: 6, kind: input, shape index: {}]
  %s7 = inlined_call_operand.vmem [shape: f32[32,1], index: 7, kind: input, shape index: {}]
  %s8 = inlined_call_operand.vmem [shape: f32[32,1], index: 8, kind: input, shape index: {}]
  %s9 = inlined_call_operand.vmem [shape: f32[32,1], index: 9, kind: input, shape index: {}]
  %s10 = inlined_call_operand.<no memory space> [shape: f32[1,1], index: 10, kind: input, shape index: {}]
  %s11 = inlined_call_operand.hbm [shape: f32[1,128], index: 11, kind: output, shape index: {}]
  %s12 = sld [smem:[#allocation0]]
  $region54: #{tpu_custom_call.1} parent=0
    _
  %s14 = ssub.s32 1, %s12
  %s15 = scalar_select 0, %s14, %s12
  %v16 = vstv %s10
  %17 = vst [vmem:[#allocation2] sm:$0x1] %v16
  $region1: #{tpu_custom_call.1} parent=0
    #allocation3 [shape = 'u8[512]{0}', space=vmem, size = 0x400, scoped, tag = 'output window, operand 0, single buffered']
    #allocation4 [shape = 's32[1]{0}', space=sflag, size = 0x4, scoped, tag = 'scoped memory for tpu_custom_call.1']
    %18 = vsyncpa [#allocation4], 0
    // Predicated region
    $region2: #{tpu_custom_call.1} parent=1 // pred_check
      _
    $region3: #{tpu_custom_call.1} parent=1 // pred_check_branch
      %20 = sbr.rel (0) target = $region5
    $region4: #{tpu_custom_call.1} parent=1 // pred_region
      _
    $region5: #{tpu_custom_call.1} parent=1 // pred_fallthru
      _
    // Predicated region
    $region6: #{tpu_custom_call.1} parent=1 // pred_check
      _
    $region7: #{tpu_custom_call.1} parent=1 // pred_check_branch
      %22 = sbr.rel (0) target = $region9
    $region8: #{tpu_custom_call.1} parent=1 // pred_region
      _
    $region9: #{tpu_custom_call.1} parent=1 // pred_fallthru
      _
    // Predicated region
    $region10: #{tpu_custom_call.1} parent=1 // pred_check
      _
    $region11: #{tpu_custom_call.1} parent=1 // pred_check_branch
      %24 = sbr.rel (0) target = $region13
    $region12: #{tpu_custom_call.1} parent=1 // pred_region
      _
    $region13: #{tpu_custom_call.1} parent=1 // pred_fallthru
      _
    // Predicated region
    $region14: #{tpu_custom_call.1} parent=1 // pred_check
      _
    $region15: #{tpu_custom_call.1} parent=1 // pred_check_branch
      %26 = sbr.rel (0) target = $region17
    $region16: #{tpu_custom_call.1} parent=1 // pred_region
      _
    $region17: #{tpu_custom_call.1} parent=1 // pred_fallthru
      _
    // Predicated region
    $region18: #{tpu_custom_call.1} parent=1 // pred_check
      _
    $region19: #{tpu_custom_call.1} parent=1 // pred_check_branch
      %28 = sbr.rel (0) target = $region21
    $region20: #{tpu_custom_call.1} parent=1 // pred_region
      _
    $region21: #{tpu_custom_call.1} parent=1 // pred_fallthru
      _
    // Predicated region
    $region22: #{tpu_custom_call.1} parent=1 // pred_check
      _
    $region23: #{tpu_custom_call.1} parent=1 // pred_check_branch
      %30 = sbr.rel (0) target = $region25
    $region24: #{tpu_custom_call.1} parent=1 // pred_region
      _
    $region25: #{tpu_custom_call.1} parent=1 // pred_fallthru
      _
    // Predicated region
    $region26: #{tpu_custom_call.1} parent=1 // pred_check
      _
    $region27: #{tpu_custom_call.1} parent=1 // pred_check_branch
      %32 = sbr.rel (0) target = $region29
    $region28: #{tpu_custom_call.1} parent=1 // pred_region
      _
    $region29: #{tpu_custom_call.1} parent=1 // pred_fallthru
      _
    // Predicated region
    $region30: #{tpu_custom_call.1} parent=1 // pred_check
      _
    $region31: #{tpu_custom_call.1} parent=1 // pred_check_branch
      %34 = sbr.rel (0) target = $region33
    $region32: #{tpu_custom_call.1} parent=1 // pred_region
      _
    $region33: #{tpu_custom_call.1} parent=1 // pred_fallthru
      _
    // Predicated region
    $region34: #{tpu_custom_call.1} parent=1 // pred_check
      _
    $region35: #{tpu_custom_call.1} parent=1 // pred_check_branch
      %36 = sbr.rel (0) target = $region37
    $region36: #{tpu_custom_call.1} parent=1 // pred_region
      _
    $region37: #{tpu_custom_call.1} parent=1 // pred_fallthru
      _
    // Predicated region
    $region38: #{tpu_custom_call.1} parent=1 // pred_check
      _
    $region39: #{tpu_custom_call.1} parent=1 // pred_check_branch
      %38 = sbr.rel (0) target = $region41
    $region40: #{tpu_custom_call.1} parent=1 // pred_region
      _
    $region41: #{tpu_custom_call.1} parent=1 // pred_fallthru
      _
    // Predicated region
    $region42: #{tpu_custom_call.1} parent=1 // pred_check
      _
    $region43: #{tpu_custom_call.1} parent=1 // pred_check_branch
      %40 = sbr.rel (0) target = $region45
    $region44: #{tpu_custom_call.1} parent=1 // pred_region
      _
    $region45: #{tpu_custom_call.1} parent=1 // pred_fallthru
      _
    %v41 = vld [vmem:[%s0] sm:$0xf]
    %v42 = vlaneseq
    %v43 = vand.u32 %v42, 127
    %vm44 = vcmp.lt.s32.totalorder %v43, 8
    %v45 = vsel %vm44, 1, 0
    %v46 = vcvt.s32.f32 %v45
    %v47 = vld [vmem:[%s1] sm:$0xff]
    %v48 = vld [vmem:[%s1 + $0x8] sm:$0xff]
    %v49 = vld [vmem:[%s1 + $0x10] sm:$0xff]
    %v50 = vld [vmem:[%s1 + $0x18] sm:$0xff]
    %v51 = vld [vmem:[%s2] sm:$0xff]
    %v52 = vld [vmem:[%s2 + $0x8] sm:$0xff]
    %v53 = vld [vmem:[%s2 + $0x10] sm:$0xff]
    %v54 = vld [vmem:[%s2 + $0x18] sm:$0xff]
    %56 = vset.pattern.permute.xlu0 0
    %57 = vperm.xlu0 %56, %v51
    %v58 = vpop.permute.xlu0 %57
    %61 = vset.pattern.permute.xlu0 0
    %62 = vperm.xlu0 %61, %v52
    %v63 = vpop.permute.xlu0 %62
    %66 = vset.pattern.permute.xlu0 0
    %67 = vperm.xlu0 %66, %v53
    %v68 = vpop.permute.xlu0 %67
    %71 = vset.pattern.permute.xlu0 0
    %72 = vperm.xlu0 %71, %v54
    %v73 = vpop.permute.xlu0 %72
    %vm75 = vcmask 31744
    %v77 = vsel %vm75, %v47, 0
    %v80 = vsel %vm75, %v48, 0
    %v83 = vsel %vm75, %v49, 0
    %v86 = vsel %vm75, %v50, 0
    %vm88 = vcmask 1043456
    %v90 = vsel %vm88, %v41, 0
    %92 = vmatpush.msra.mxu0 0.0
    %93 = vmatpush.msra.mxu0 0.0
    %94 = vmatpush.msra.mxu0 0.0
    %95 = vmatpush.msra.mxu0 0.0
    %96 = vmatpush.msra.mxu0 0.0
    %97 = vmatpush.msra.mxu0 0.0
    %98 = vmatpush.msra.mxu0 0.0
    %99 = vmatpush.msra.mxu0 0.0
    %100 = vmatpush.msra.mxu0 0.0
    %101 = vmatpush.msra.mxu0 0.0
    %102 = vmatpush.msra.mxu0 0.0
    %103 = vmatpush.msra.mxu0 0.0
    %104 = vmatpush.msra.mxu0 0.0
    %105 = vmatpush.msra.mxu0 0.0
    %106 = vmatpush.msra.mxu0 0.0
    %107 = vmatpush.msra.mxu0 %v90
    %108 = vmatmul.f32.gmra.mxu0 %v77
    %v109 = vpop.f32.mrf.mxu0
    %v110 = vadd.f32 %v58, %v109
    %111 = vmatmul.f32.gmra.mxu0 %v80
    %v112 = vpop.f32.mrf.mxu0
    %v113 = vadd.f32 %v63, %v112
    %114 = vmatmul.f32.gmra.mxu0 %v83
    %v115 = vpop.f32.mrf.mxu0
    %v116 = vadd.f32 %v68, %v115
    %117 = vmatmul.f32.gmra.mxu0 %v86
    %v118 = vpop.f32.mrf.mxu0
    %v119 = vadd.f32 %v73, %v118
    %120 = vdwg.mxu0
    %v121 = vmax.f32 %v110, 0.0
    %v122 = vmax.f32 %v113, 0.0
    %v123 = vmax.f32 %v116, 0.0
    %v124 = vmax.f32 %v119, 0.0
    %v125 = vmul.f32 %v121, %v46
    %v126 = vmul.f32 %v122, %v46
    %v127 = vmul.f32 %v123, %v46
    %v128 = vmul.f32 %v124, %v46
    %129 = vadd.xlane.f32.xlu0 %v125
    %v130 = vpop.xlane.xlu0 %129
    %131 = vadd.xlane.f32.xlu0 %v126
    %v132 = vpop.xlane.xlu0 %131
    %133 = vadd.xlane.f32.xlu0 %v127
    %v134 = vpop.xlane.xlu0 %133
    %135 = vadd.xlane.f32.xlu0 %v128
    %v136 = vpop.xlane.xlu0 %135
    %v137 = vmul.f32 %v125, %v121
    %v138 = vmul.f32 %v126, %v122
    %v139 = vmul.f32 %v127, %v123
    %v140 = vmul.f32 %v128, %v124
    %141 = vadd.xlane.f32.xlu0 %v137
    %v142 = vpop.xlane.xlu0 %141
    %143 = vadd.xlane.f32.xlu0 %v138
    %v144 = vpop.xlane.xlu0 %143
    %145 = vadd.xlane.f32.xlu0 %v139
    %v146 = vpop.xlane.xlu0 %145
    %147 = vadd.xlane.f32.xlu0 %v140
    %v148 = vpop.xlane.xlu0 %147
    %v149 = vmul.f32 %v130, 0.125
    %v150 = vmul.f32 %v132, 0.125
    %v151 = vmul.f32 %v134, 0.125
    %v152 = vmul.f32 %v136, 0.125
    %v153 = vmul.f32 %v142, 0.125
    %v154 = vmul.f32 %v144, 0.125
    %v155 = vmul.f32 %v146, 0.125
    %v156 = vmul.f32 %v148, 0.125
    %v157 = vmul.f32 %v149, %v149
    %v158 = vmul.f32 %v150, %v150
    %v159 = vmul.f32 %v151, %v151
    %v160 = vmul.f32 %v152, %v152
    %v161 = vsub.f32 %v153, %v157
    %v162 = vsub.f32 %v154, %v158
    %v163 = vsub.f32 %v155, %v159
    %v164 = vsub.f32 %v156, %v160
    %v165 = vmax.f32 %v161, 0.0
    %v166 = vmax.f32 %v162, 0.0
    %v167 = vmax.f32 %v163, 0.0
    %v168 = vmax.f32 %v164, 0.0
    %v169 = vld [vmem:[%s3] sm:$0xff]
    %v170 = vld [vmem:[%s3 + $0x8] sm:$0xff]
    %v171 = vld [vmem:[%s3 + $0x10] sm:$0xff]
    %v172 = vld [vmem:[%s3 + $0x18] sm:$0xff]
    %v173 = vadd.f32 %v165, 1e-05
    %v174 = vadd.f32 %v166, 1e-05
    %v175 = vadd.f32 %v167, 1e-05
    %v176 = vadd.f32 %v168, 1e-05
    %v177 = vrsqrt.pop %v173
    %v178 = vmul.f32 %v177, %v173
    %v179 = vmul.f32 %v178, %v177
    %v180 = vmul.f32 0.5, %v179
    %v181 = vsub.f32 1.5, %v180
    %v182 = vmul.f32 %v177, %v181
    %vm183 = vweird.f32 %v173
    %vm184 = vweird.f32 %v177
    %vm185 = vmor %vm183, %vm184
    %v186 = vsel %vm185, %v177, %v182
    %v187 = vrsqrt.pop %v174
    %v188 = vmul.f32 %v187, %v174
    %v189 = vmul.f32 %v188, %v187
    %v190 = vmul.f32 0.5, %v189
    %v191 = vsub.f32 1.5, %v190
    %v192 = vmul.f32 %v187, %v191
    %vm193 = vweird.f32 %v174
    %vm194 = vweird.f32 %v187
    %vm195 = vmor %vm193, %vm194
    %v196 = vsel %vm195, %v187, %v192
    %v197 = vrsqrt.pop %v175
    %v198 = vmul.f32 %v197, %v175
    %v199 = vmul.f32 %v198, %v197
    %v200 = vmul.f32 0.5, %v199
    %v201 = vsub.f32 1.5, %v200
    %v202 = vmul.f32 %v197, %v201
    %vm203 = vweird.f32 %v175
    %vm204 = vweird.f32 %v197
    %vm205 = vmor %vm203, %vm204
    %v206 = vsel %vm205, %v197, %v202
    %v207 = vrsqrt.pop %v176
    %v208 = vmul.f32 %v207, %v176
    %v209 = vmul.f32 %v208, %v207
    %v210 = vmul.f32 0.5, %v209
    %v211 = vsub.f32 1.5, %v210
    %v212 = vmul.f32 %v207, %v211
    %vm213 = vweird.f32 %v176
    %vm214 = vweird.f32 %v207
    %vm215 = vmor %vm213, %vm214
    %v216 = vsel %vm215, %v207, %v212
    %v217 = vmul.f32 %v169, %v186
    %v218 = vmul.f32 %v170, %v196
    %v219 = vmul.f32 %v171, %v206
    %v220 = vmul.f32 %v172, %v216
    %v221 = vld [vmem:[%s4] sm:$0xff]
    %v222 = vld [vmem:[%s4 + $0x8] sm:$0xff]
    %v223 = vld [vmem:[%s4 + $0x10] sm:$0xff]
    %v224 = vld [vmem:[%s4 + $0x18] sm:$0xff]
    %v225 = vmul.f32 %v149, %v217
    %v226 = vmul.f32 %v150, %v218
    %v227 = vmul.f32 %v151, %v219
    %v228 = vmul.f32 %v152, %v220
    %v229 = vsub.f32 %v221, %v225
    %v230 = vsub.f32 %v222, %v226
    %v231 = vsub.f32 %v223, %v227
    %v232 = vsub.f32 %v224, %v228
    %234 = vset.pattern.permute.xlu0 0
    %235 = vperm.xlu0 %234, %v217
    %v236 = vpop.permute.xlu0 %235
    %239 = vset.pattern.permute.xlu0 0
    %240 = vperm.xlu0 %239, %v218
    %v241 = vpop.permute.xlu0 %240
    %244 = vset.pattern.permute.xlu0 0
    %245 = vperm.xlu0 %244, %v219
    %v246 = vpop.permute.xlu0 %245
    %249 = vset.pattern.permute.xlu0 0
    %250 = vperm.xlu0 %249, %v220
    %v251 = vpop.permute.xlu0 %250
    %v253 = vmul.f32 %v121, %v236
    %v254 = vmul.f32 %v122, %v241
    %v255 = vmul.f32 %v123, %v246
    %v256 = vmul.f32 %v124, %v251
    %258 = vset.pattern.permute.xlu0 0
    %259 = vperm.xlu0 %258, %v229
    %v260 = vpop.permute.xlu0 %259
    %263 = vset.pattern.permute.xlu0 0
    %264 = vperm.xlu0 %263, %v230
    %v265 = vpop.permute.xlu0 %264
    %268 = vset.pattern.permute.xlu0 0
    %269 = vperm.xlu0 %268, %v231
    %v270 = vpop.permute.xlu0 %269
    %273 = vset.pattern.permute.xlu0 0
    %274 = vperm.xlu0 %273, %v232
    %v275 = vpop.permute.xlu0 %274
    %v277 = vadd.f32 %v253, %v260
    %v278 = vadd.f32 %v254, %v265
    %v279 = vadd.f32 %v255, %v270
    %v280 = vadd.f32 %v256, %v275
    %v281 = vld [vmem:[%s5] sm:$0xff]
    %v282 = vld [vmem:[%s5 + $0x8] sm:$0xff]
    %v283 = vld [vmem:[%s5 + $0x10] sm:$0xff]
    %v284 = vld [vmem:[%s5 + $0x18] sm:$0xff]
    %v285 = vld [vmem:[%s6] sm:$0xff]
    %v286 = vld [vmem:[%s6 + $0x8] sm:$0xff]
    %v287 = vld [vmem:[%s6 + $0x10] sm:$0xff]
    %v288 = vld [vmem:[%s6 + $0x18] sm:$0xff]
    %290 = vset.pattern.permute.xlu0 0
    %291 = vperm.xlu0 %290, %v285
    %v292 = vpop.permute.xlu0 %291
    %295 = vset.pattern.permute.xlu0 0
    %296 = vperm.xlu0 %295, %v286
    %v297 = vpop.permute.xlu0 %296
    %300 = vset.pattern.permute.xlu0 0
    %301 = vperm.xlu0 %300, %v287
    %v302 = vpop.permute.xlu0 %301
    %305 = vset.pattern.permute.xlu0 0
    %306 = vperm.xlu0 %305, %v288
    %v307 = vpop.permute.xlu0 %306
    %vm309 = vcmask 261120
    %v311 = vsel %vm309, %v281, 0
    %v314 = vsel %vm309, %v282, 0
    %v317 = vsel %vm309, %v283, 0
    %v320 = vsel %vm309, %v284, 0
    %322 = vmatpush.msra.mxu0 0.0
    %323 = vmatpush.msra.mxu0 0.0
    %324 = vmatpush.msra.mxu0 0.0
    %325 = vmatpush.msra.mxu0 0.0
    %326 = vmatpush.msra.mxu0 0.0
    %327 = vmatpush.msra.mxu0 0.0
    %328 = vmatpush.msra.mxu0 0.0
    %329 = vmatpush.msra.mxu0 0.0
    %330 = vmatpush.msra.mxu0 0.0
    %331 = vmatpush.msra.mxu0 0.0
    %332 = vmatpush.msra.mxu0 0.0
    %333 = vmatpush.msra.mxu0 0.0
    %334 = vmatpush.msra.mxu0 %v280
    %335 = vmatpush.msra.mxu0 %v279
    %336 = vmatpush.msra.mxu0 %v278
    %337 = vmatpush.msra.mxu0 %v277
    %338 = vmatmul.f32.gmra.mxu0 %v311
    %v339 = vpop.f32.mrf.mxu0
    %v340 = vadd.f32 %v292, %v339
    %341 = vmatmul.f32.gmra.mxu0 %v314
    %v342 = vpop.f32.mrf.mxu0
    %v343 = vadd.f32 %v297, %v342
    %344 = vmatmul.f32.gmra.mxu0 %v317
    %v345 = vpop.f32.mrf.mxu0
    %v346 = vadd.f32 %v302, %v345
    %347 = vmatmul.f32.gmra.mxu0 %v320
    %v348 = vpop.f32.mrf.mxu0
    %v349 = vadd.f32 %v307, %v348
    %350 = vdwg.mxu0
    %v351 = vmax.f32 %v340, 0.0
    %v352 = vmax.f32 %v343, 0.0
    %v353 = vmax.f32 %v346, 0.0
    %v354 = vmax.f32 %v349, 0.0
    %v355 = vmul.f32 %v351, %v46
    %v356 = vmul.f32 %v352, %v46
    %v357 = vmul.f32 %v353, %v46
    %v358 = vmul.f32 %v354, %v46
    %359 = vadd.xlane.f32.xlu0 %v355
    %v360 = vpop.xlane.xlu0 %359
    %361 = vadd.xlane.f32.xlu0 %v356
    %v362 = vpop.xlane.xlu0 %361
    %363 = vadd.xlane.f32.xlu0 %v357
    %v364 = vpop.xlane.xlu0 %363
    %365 = vadd.xlane.f32.xlu0 %v358
    %v366 = vpop.xlane.xlu0 %365
    %v367 = vmul.f32 %v355, %v351
    %v368 = vmul.f32 %v356, %v352
    %v369 = vmul.f32 %v357, %v353
    %v370 = vmul.f32 %v358, %v354
    %371 = vadd.xlane.f32.xlu0 %v367
    %v372 = vpop.xlane.xlu0 %371
    %373 = vadd.xlane.f32.xlu0 %v368
    %v374 = vpop.xlane.xlu0 %373
    %375 = vadd.xlane.f32.xlu0 %v369
    %v376 = vpop.xlane.xlu0 %375
    %377 = vadd.xlane.f32.xlu0 %v370
    %v378 = vpop.xlane.xlu0 %377
    %v379 = vmul.f32 %v360, 0.125
    %v380 = vmul.f32 %v362, 0.125
    %v381 = vmul.f32 %v364, 0.125
    %v382 = vmul.f32 %v366, 0.125
    %v383 = vmul.f32 %v372, 0.125
    %v384 = vmul.f32 %v374, 0.125
    %v385 = vmul.f32 %v376, 0.125
    %v386 = vmul.f32 %v378, 0.125
    %v387 = vmul.f32 %v379, %v379
    %v388 = vmul.f32 %v380, %v380
    %v389 = vmul.f32 %v381, %v381
    %v390 = vmul.f32 %v382, %v382
    %v391 = vsub.f32 %v383, %v387
    %v392 = vsub.f32 %v384, %v388
    %v393 = vsub.f32 %v385, %v389
    %v394 = vsub.f32 %v386, %v390
    %v395 = vmax.f32 %v391, 0.0
    %v396 = vmax.f32 %v392, 0.0
    %v397 = vmax.f32 %v393, 0.0
    %v398 = vmax.f32 %v394, 0.0
    %v399 = vld [vmem:[%s7] sm:$0xff]
    %v400 = vld [vmem:[%s7 + $0x8] sm:$0xff]
    %v401 = vld [vmem:[%s7 + $0x10] sm:$0xff]
    %v402 = vld [vmem:[%s7 + $0x18] sm:$0xff]
    %v403 = vadd.f32 %v395, 1e-05
    %v404 = vadd.f32 %v396, 1e-05
    %v405 = vadd.f32 %v397, 1e-05
    %v406 = vadd.f32 %v398, 1e-05
    %v407 = vrsqrt.pop %v403
    %v408 = vmul.f32 %v407, %v403
    %v409 = vmul.f32 %v408, %v407
    %v410 = vmul.f32 0.5, %v409
    %v411 = vsub.f32 1.5, %v410
    %v412 = vmul.f32 %v407, %v411
    %vm413 = vweird.f32 %v403
    %vm414 = vweird.f32 %v407
    %vm415 = vmor %vm413, %vm414
    %v416 = vsel %vm415, %v407, %v412
    %v417 = vrsqrt.pop %v404
    %v418 = vmul.f32 %v417, %v404
    %v419 = vmul.f32 %v418, %v417
    %v420 = vmul.f32 0.5, %v419
    %v421 = vsub.f32 1.5, %v420
    %v422 = vmul.f32 %v417, %v421
    %vm423 = vweird.f32 %v404
    %vm424 = vweird.f32 %v417
    %vm425 = vmor %vm423, %vm424
    %v426 = vsel %vm425, %v417, %v422
    %v427 = vrsqrt.pop %v405
    %v428 = vmul.f32 %v427, %v405
    %v429 = vmul.f32 %v428, %v427
    %v430 = vmul.f32 0.5, %v429
    %v431 = vsub.f32 1.5, %v430
    %v432 = vmul.f32 %v427, %v431
    %vm433 = vweird.f32 %v405
    %vm434 = vweird.f32 %v427
    %vm435 = vmor %vm433, %vm434
    %v436 = vsel %vm435, %v427, %v432
    %v437 = vrsqrt.pop %v406
    %v438 = vmul.f32 %v437, %v406
    %v439 = vmul.f32 %v438, %v437
    %v440 = vmul.f32 0.5, %v439
    %v441 = vsub.f32 1.5, %v440
    %v442 = vmul.f32 %v437, %v441
    %vm443 = vweird.f32 %v406
    %vm444 = vweird.f32 %v437
    %vm445 = vmor %vm443, %vm444
    %v446 = vsel %vm445, %v437, %v442
    %v447 = vmul.f32 %v399, %v416
    %v448 = vmul.f32 %v400, %v426
    %v449 = vmul.f32 %v401, %v436
    %v450 = vmul.f32 %v402, %v446
    %v451 = vld [vmem:[%s8] sm:$0xff]
    %v452 = vld [vmem:[%s8 + $0x8] sm:$0xff]
    %v453 = vld [vmem:[%s8 + $0x10] sm:$0xff]
    %v454 = vld [vmem:[%s8 + $0x18] sm:$0xff]
    %v455 = vmul.f32 %v379, %v447
    %v456 = vmul.f32 %v380, %v448
    %v457 = vmul.f32 %v381, %v449
    %v458 = vmul.f32 %v382, %v450
    %v459 = vsub.f32 %v451, %v455
    %v460 = vsub.f32 %v452, %v456
    %v461 = vsub.f32 %v453, %v457
    %v462 = vsub.f32 %v454, %v458
    %464 = vset.pattern.permute.xlu0 0
    %465 = vperm.xlu0 %464, %v447
    %v466 = vpop.permute.xlu0 %465
    %469 = vset.pattern.permute.xlu0 0
    %470 = vperm.xlu0 %469, %v448
    %v471 = vpop.permute.xlu0 %470
    %474 = vset.pattern.permute.xlu0 0
    %475 = vperm.xlu0 %474, %v449
    %v476 = vpop.permute.xlu0 %475
    %479 = vset.pattern.permute.xlu0 0
    %480 = vperm.xlu0 %479, %v450
    %v481 = vpop.permute.xlu0 %480
    %v483 = vmul.f32 %v351, %v466
    %v484 = vmul.f32 %v352, %v471
    %v485 = vmul.f32 %v353, %v476
    %v486 = vmul.f32 %v354, %v481
    %488 = vset.pattern.permute.xlu0 0
    %489 = vperm.xlu0 %488, %v459
    %v490 = vpop.permute.xlu0 %489
    %493 = vset.pattern.permute.xlu0 0
    %494 = vperm.xlu0 %493, %v460
    %v495 = vpop.permute.xlu0 %494
    %498 = vset.pattern.permute.xlu0 0
    %499 = vperm.xlu0 %498, %v461
    %v500 = vpop.permute.xlu0 %499
    %503 = vset.pattern.permute.xlu0 0
    %504 = vperm.xlu0 %503, %v462
    %v505 = vpop.permute.xlu0 %504
    %v507 = vadd.f32 %v483, %v490
    %v508 = vadd.f32 %v484, %v495
    %v509 = vadd.f32 %v485, %v500
    %v510 = vadd.f32 %v486, %v505
    %v511 = vld [vmem:[%s9] sm:$0xff]
    %v512 = vld [vmem:[%s9 + $0x8] sm:$0xff]
    %v513 = vld [vmem:[%s9 + $0x10] sm:$0xff]
    %v514 = vld [vmem:[%s9 + $0x18] sm:$0xff]
    %v515 = vld [vmem:[#allocation2] sm:$0x1]
    %517 = vset.pattern.permute.xlu0 0
    %518 = vperm.xlu0 %517, %v511
    %v519 = vpop.permute.xlu0 %518
    %522 = vset.pattern.permute.xlu0 0
    %523 = vperm.xlu0 %522, %v512
    %v524 = vpop.permute.xlu0 %523
    %527 = vset.pattern.permute.xlu0 0
    %528 = vperm.xlu0 %527, %v513
    %v529 = vpop.permute.xlu0 %528
    %532 = vset.pattern.permute.xlu0 0
    %533 = vperm.xlu0 %532, %v514
    %v534 = vpop.permute.xlu0 %533
    %v536 = vmul.f32 %v507, %v519
    %v537 = vmul.f32 %v508, %v524
    %v538 = vmul.f32 %v509, %v529
    %v539 = vmul.f32 %v510, %v534
    %v540 = vadd.f32 %v536, %v537
    %v541 = vadd.f32 %v540, %v538
    %v542 = vadd.f32 %v541, %v539
    %v543 = vrot.slane %v542, 4
    %v544 = vadd.f32 %v542, %v543
    %v545 = vrot.slane %v544, 2
    %v546 = vadd.f32 %v544, %v545
    %v547 = vrot.slane %v546, 1
    %v548 = vadd.f32 %v546, %v547
    %550 = vset.pattern.permute.xlu0 0
    %551 = vperm.xlu0 %550, %v515
    %v552 = vpop.permute.xlu0 %551
    %v554 = vperm.slane %v552, 0
    %v555 = vadd.f32 %v548, %v554
    %v556 = vmul.f32 %v555, 1.442695
    %v557 = vpow.pop %v556
    %558 = vst [vmem:[#allocation3] sm:$0x1] %v557
    // Predicated region
    $region46: #{tpu_custom_call.1} parent=1 // pred_check
      _
    $region47: #{tpu_custom_call.1} parent=1 // pred_check_branch
      %560 = sbr.rel (0) target = $region49
    $region48: #{tpu_custom_call.1} parent=1 // pred_region
      %562 = vsyncadd [#allocation4], 0
      %s564 = sshll.u32 [#allocation3], 4
      %s565 = int_to_ptr.vmem [resolvable:$true] %s564
      %s566 = sshll.u32 %s11, 4
      %s567 = int_to_ptr.hbm [resolvable:$true] %s566
      %569 = dma.vmem_to_hbm [thread:$0]  %s565, 16, %s567, [#allocation4]
    $region49: #{tpu_custom_call.1} parent=1 // pred_fallthru
      _
    // Predicated region
    $region50: #{tpu_custom_call.1} parent=1 // pred_check
      _
    $region51: #{tpu_custom_call.1} parent=1 // pred_check_branch
      %571 = sbr.rel (0) target = $region53
    $region52: #{tpu_custom_call.1} parent=1 // pred_region
      %573 = dma.done [#allocation4], 16
    $region53: #{tpu_custom_call.1} parent=1 // pred_fallthru
      _
    %574 = vsyncpa [#allocation4], 1

</llo_original>
